<compile_context>
chip_gen: v7x
topology: tpu7x:2x2x1
jax: 0.10.0
libtpu: 0.0.40
codegen_flags: <defaults>
</compile_context>

<pallas_src>
import functools

import jax
import jax.numpy as jnp
from jax import lax
from jax.experimental import pallas as pl
from jax.experimental.pallas import tpu as pltpu


def _round_up(x, m):
    return ((x + m - 1) // m) * m


def _attention_kernel(h_ref, enc_t_ref, w_enc_ref, w_hid_ref, b_ref, wv_ref,
                      out_ref, ep_ref, *, src_len, s_pad):
    # ---- grid-invariant prologue (runs once, result resident in VMEM) ------
    # ep[i, s] = sum_k W_attn[i, dec+k] * enc[s, k]   -> [dec_hid, s_pad]
    @pl.when(pl.program_id(0) == 0)
    def _():
        ep_ref[...] = jnp.dot(w_enc_ref[...], enc_t_ref[...],
                              preferred_element_type=jnp.float32)

    # ---- per-timestep work: VPU + XLU + EUP only (no MXU) ------------------
    # hb[i] = sum_j W_attn[i, j] * h[j] + b[i]        (VALU mul + lane reduce)
    h_row = h_ref[0]                                              # [1, dec_in]
    hb = jnp.sum(w_hid_ref[...] * h_row, axis=1, keepdims=True) + b_ref[...]

    # energy^T[i, s] = tanh(ep[i, s] + hb[i])
    energy_t = jnp.tanh(ep_ref[...] + hb)                         # [dec, s_pad]

    # scores[0, s] = sum_i v[i] * energy^T[i, s]      (VALU mul + sublane reduce)
    # -> lane-dense [1, s_pad] row, no transpose, full-width store.
    scores = jnp.sum(wv_ref[...] * energy_t, axis=0, keepdims=True)

    if src_len < s_pad:  # static branch: mask the padded tail before softmax
        lane = lax.broadcasted_iota(jnp.int32, (1, s_pad), 1)
        scores = jnp.where(lane < src_len, scores, -1e30)

    m = jnp.max(scores, axis=-1, keepdims=True)
    e = jnp.exp(scores - m)
    denom = jnp.sum(e, axis=-1, keepdims=True)
    # single reciprocal + multiply (use approx=True once src_len is tiled large)
    out_ref[0] = e * pl.reciprocal(denom, approx=False)


def prepare_attention_params(w_attn, b_attn, w_v):
    """One-time (module-init-time) re-layout of the PyTorch Linear parameters.

    cat order is (hidden, encoder), so W_attn[:, :dec] multiplies the hidden
    part and W_attn[:, dec:] the encoder part.  No transposes are needed for
    the transposed (lane-dense) kernel formulation.
    """
    dec_hid = w_attn.shape[0]
    w_hid = w_attn[:, :dec_hid].astype(jnp.float32)      # [dec_out, dec_in]
    w_enc = w_attn[:, dec_hid:].astype(jnp.float32)      # [dec_out, enc_hid]
    b_col = b_attn.reshape(dec_hid, 1).astype(jnp.float32)
    wv_col = w_v.reshape(dec_hid, 1).astype(jnp.float32)  # v weight as a column
    return (w_enc, w_hid, b_col, wv_col)


def _attention_steps(h_steps, encoder_outputs, kparams):
    """Fused attention over T decoder timesteps in ONE gridded pallas_call.

    h_steps:          [T, 1, dec_hid]  (layer-2 decoder hidden per timestep)
    encoder_outputs:  [1, src_len, enc_hid]
    returns:          [T, src_len] softmax attention weights (float32)
    """
    w_enc, w_hid, b_col, wv_col = kparams
    batch, src_len, enc_hid = encoder_outputs.shape
    assert batch == 1, "PyTorch forward as written only works for batch_size == 1"
    dec_hid = w_hid.shape[0]
    n_steps = h_steps.shape[0]
    s_pad = _round_up(max(src_len, 128), 128)   # lane-dense output width

    # Encoder slab, transposed + zero-padded so src positions sit on lanes.
    # (Loop-invariant across decoder steps -> built once per sequence.)
    enc_t = jnp.zeros((enc_hid, s_pad), jnp.float32)
    enc_t = enc_t.at[:, :src_len].set(encoder_outputs[0].T.astype(jnp.float32))

    kernel = functools.partial(_attention_kernel, src_len=src_len, s_pad=s_pad)

    out = pl.pallas_call(
        kernel,
        grid=(n_steps,),
        in_specs=[
            pl.BlockSpec((1, 1, dec_hid), lambda t: (t, 0, 0)),   # per-step hidden
            pl.BlockSpec((enc_hid, s_pad), lambda t: (0, 0)),     # resident
            pl.BlockSpec((dec_hid, enc_hid), lambda t: (0, 0)),   # resident
            pl.BlockSpec((dec_hid, dec_hid), lambda t: (0, 0)),   # resident
            pl.BlockSpec((dec_hid, 1), lambda t: (0, 0)),         # resident
            pl.BlockSpec((dec_hid, 1), lambda t: (0, 0)),         # resident
        ],
        out_specs=pl.BlockSpec((1, 1, s_pad), lambda t: (t, 0, 0)),
        out_shape=jax.ShapeDtypeStruct((n_steps, 1, s_pad), jnp.float32),
        scratch_shapes=[pltpu.VMEM((dec_hid, s_pad), jnp.float32)],
        # scratch carries the prologue result across steps -> "arbitrary".
        compiler_params=pltpu.CompilerParams(
            dimension_semantics=("arbitrary",)),
    )(h_steps.astype(jnp.float32), enc_t, w_enc, w_hid, b_col, wv_col)

    return out[:, 0, :src_len]


def attention_forward(hidden, encoder_outputs, kparams):
    """Exact module semantics: hidden [n_layers,1,dec], enc [1,S,enc] -> [1,S]."""
    h = hidden[2:3, 0, :]                  # hidden[2:3, :, :] for batch 1 -> [1, dec]
    return _attention_steps(h[:, None, :], encoder_outputs, kparams)


def attention_forward_many(hidden_stack, encoder_outputs, kparams):
    """T independent module evaluations (one per decoder timestep) fused into a
    single gridded kernel.  hidden_stack: [T, n_layers, 1, dec_hid] -> [T, S]."""
    h_steps = hidden_stack[:, 2, :, :]     # layer-2 hidden per step -> [T, 1, dec]
    return _attention_steps(h_steps, encoder_outputs, kparams)


def _reference(hidden, encoder_outputs, torch_params):
    """Pure-JAX mirror of the PyTorch forward, for correctness checking."""
    w_attn, b_attn, w_v = torch_params
    src_len = encoder_outputs.shape[1]
    h = hidden[2:3, :, :]                                   # [1, 1, dec]
    h = jnp.tile(h, (1, src_len, 1))                        # [1, S, dec]
    cat = jnp.concatenate((h, encoder_outputs), axis=2)     # [1, S, dec+enc]
    energy = jnp.tanh(cat @ w_attn.T + b_attn)              # [1, S, dec]
    attention = (energy @ w_v.T)[..., 0]                    # [1, S]
    return jax.nn.softmax(attention, axis=1)


if __name__ == "__main__":
    enc_hid, dec_hid, src_len, n_layers, n_steps = 32, 32, 8, 4, 6

    key = jax.random.PRNGKey(0)
    k1, k2, k3, k4, k5, k6 = jax.random.split(key, 6)

    # inputs (module call)
    hidden = jax.random.normal(k1, (n_layers, 1, dec_hid), jnp.float32)
    encoder_outputs = jax.random.normal(k2, (1, src_len, enc_hid), jnp.float32)

    # deterministic parameter init (nn.Linear-style uniform bounds)
    lim_a = float((enc_hid + dec_hid) ** -0.5)
    lim_v = float(dec_hid ** -0.5)
    w_attn = jax.random.uniform(k3, (dec_hid, enc_hid + dec_hid), jnp.float32, -lim_a, lim_a)
    b_attn = jax.random.uniform(k4, (dec_hid,), jnp.float32, -lim_a, lim_a)
    w_v = jax.random.uniform(k5, (1, dec_hid), jnp.float32, -lim_v, lim_v)
    torch_params = (w_attn, b_attn, w_v)

    # init-time weight re-layout (hoisted out of the per-call path)
    kparams = prepare_attention_params(w_attn, b_attn, w_v)

    # 1) single step -- exact PyTorch module semantics
    out = attention_forward(hidden, encoder_outputs, kparams)
    jax.block_until_ready(out)
    ref = _reference(hidden, encoder_outputs, torch_params)
    assert out.shape == (1, src_len)
    assert jnp.allclose(out, ref, atol=2e-5, rtol=2e-5), \
        f"max abs err {float(jnp.max(jnp.abs(out - ref)))}"

    # 2) many decoder timesteps fused into one gridded call (launch amortization,
    #    weights + encoder projection resident in VMEM across the grid)
    hidden_stack = jax.random.normal(k6, (n_steps, n_layers, 1, dec_hid), jnp.float32)
    out_many = attention_forward_many(hidden_stack, encoder_outputs, kparams)
    jax.block_until_ready(out_many)
    ref_many = jnp.concatenate(
        [_reference(hidden_stack[t], encoder_outputs, torch_params)
         for t in range(n_steps)], axis=0)
    assert out_many.shape == (n_steps, src_len)
    assert jnp.allclose(out_many, ref_many, atol=2e-5, rtol=2e-5), \
        f"max abs err {float(jnp.max(jnp.abs(out_many - ref_many)))}"

    print("KERNEL_OK")
</pallas_src>

<mosaic_0001>
module attributes {stable_mosaic.version = 11 : i64} {
  func.func @_attention_kernel(%arg0: i32, %arg1: memref<1x1x32xf32, #tpu.memory_space<vmem>>, %arg2: memref<32x128xf32, #tpu.memory_space<vmem>>, %arg3: memref<32x32xf32, #tpu.memory_space<vmem>>, %arg4: memref<32x32xf32, #tpu.memory_space<vmem>>, %arg5: memref<32x1xf32, #tpu.memory_space<vmem>>, %arg6: memref<32x1xf32, #tpu.memory_space<vmem>>, %arg7: memref<1x1x128xf32, #tpu.memory_space<vmem>>, %arg8: memref<32x128xf32, #tpu.memory_space<vmem>>) attributes {dimension_semantics = [#tpu.dimension_semantics<arbitrary>], iteration_bounds = array<i64: 1>, scalar_prefetch = 0 : i64, scratch_operands = 1 : i64, tpu.core_type = #tpu.core_type<tc>, window_params = [{transform_indices = @transform_0, window_bounds = array<i64: 1, 1, 32>}, {pipeline_mode = #tpu.pipeline_mode<synchronous>, transform_indices = @transform_1, window_bounds = array<i64: 32, 128>}, {pipeline_mode = #tpu.pipeline_mode<synchronous>, transform_indices = @transform_2, window_bounds = array<i64: 32, 32>}, {pipeline_mode = #tpu.pipeline_mode<synchronous>, transform_indices = @transform_3, window_bounds = array<i64: 32, 32>}, {pipeline_mode = #tpu.pipeline_mode<synchronous>, transform_indices = @transform_4, window_bounds = array<i64: 32, 1>}, {pipeline_mode = #tpu.pipeline_mode<synchronous>, transform_indices = @transform_5, window_bounds = array<i64: 32, 1>}, {transform_indices = @transform_6, window_bounds = array<i64: 1, 1, 128>}]} {
    %c0_i32 = arith.constant 0 : i32
    %0 = arith.cmpi eq, %arg0, %c0_i32 : i32
    %1 = arith.extui %0 : i1 to i32
    %c0_i32_0 = arith.constant 0 : i32
    %2 = arith.cmpi ne, %1, %c0_i32_0 : i32
    scf.if %2 {
      %c0_18 = arith.constant 0 : index
      %c0_19 = arith.constant 0 : index
      %39 = vector.load %arg3[%c0_18, %c0_19] : memref<32x32xf32, #tpu.memory_space<vmem>>, vector<32x32xf32>
      %c0_20 = arith.constant 0 : index
      %c0_21 = arith.constant 0 : index
      %40 = vector.load %arg2[%c0_20, %c0_21] : memref<32x128xf32, #tpu.memory_space<vmem>>, vector<32x128xf32>
      %cst_22 = arith.constant dense<0.000000e+00> : vector<32x128xf32>
      %41 = tpu.matmul %39, %40, %cst_22 {dimension_numbers = #tpu.dot_dimension_numbers<[1], [0], [0], [1], [0, 0, 1, 1], [], []>} : vector<32x32xf32>, vector<32x128xf32>, vector<32x128xf32> -> vector<32x128xf32>
      %c0_23 = arith.constant 0 : index
      %c0_24 = arith.constant 0 : index
      %42 = vector.load %arg8[%c0_23, %c0_24] : memref<32x128xf32, #tpu.memory_space<vmem>>, vector<32x128xf32>
      tpu.vector_store %arg8[%c0_23, %c0_24], %41 {strides = array<i32>} : memref<32x128xf32, #tpu.memory_space<vmem>>, vector<32x128xf32>,
    } else {
    }
    %c0 = arith.constant 0 : index
    %c0_1 = arith.constant 0 : index
    %c0_2 = arith.constant 0 : index
    %3 = vector.load %arg1[%c0, %c0_1, %c0_2] : memref<1x1x32xf32, #tpu.memory_space<vmem>>, vector<1x1x32xf32>
    %4 = vector.shape_cast %3 : vector<1x1x32xf32> to vector<1x32xf32>
    %c0_3 = arith.constant 0 : index
    %c0_4 = arith.constant 0 : index
    %5 = vector.load %arg4[%c0_3, %c0_4] : memref<32x32xf32, #tpu.memory_space<vmem>>, vector<32x32xf32>
    %6 = vector.broadcast %4 : vector<1x32xf32> to vector<32x32xf32>
    %7 = arith.mulf %5, %6 : vector<32x32xf32>
    %cst = arith.constant dense<0.000000e+00> : vector<32xf32>
    %8 = vector.multi_reduction <add>, %7, %cst [1] : vector<32x32xf32> to vector<32xf32>
    %9 = vector.shape_cast %8 : vector<32xf32> to vector<32x1xf32>
    %c0_5 = arith.constant 0 : index
    %c0_6 = arith.constant 0 : index
    %10 = vector.load %arg5[%c0_5, %c0_6] : memref<32x1xf32, #tpu.memory_space<vmem>>, vector<32x1xf32>
    %11 = arith.addf %9, %10 : vector<32x1xf32>
    %c0_7 = arith.constant 0 : index
    %c0_8 = arith.constant 0 : index
    %12 = vector.load %arg8[%c0_7, %c0_8] : memref<32x128xf32, #tpu.memory_space<vmem>>, vector<32x128xf32>
    %13 = vector.broadcast %11 : vector<32x1xf32> to vector<32x128xf32>
    %14 = arith.addf %12, %13 : vector<32x128xf32>
    %15 = math.tanh %14 : vector<32x128xf32>
    %c0_9 = arith.constant 0 : index
    %c0_10 = arith.constant 0 : index
    %16 = vector.load %arg6[%c0_9, %c0_10] : memref<32x1xf32, #tpu.memory_space<vmem>>, vector<32x1xf32>
    %17 = vector.broadcast %16 : vector<32x1xf32> to vector<32x128xf32>
    %18 = arith.mulf %17, %15 : vector<32x128xf32>
    %cst_11 = arith.constant dense<0.000000e+00> : vector<128xf32>
    %19 = vector.multi_reduction <add>, %18, %cst_11 [0] : vector<32x128xf32> to vector<128xf32>
    %20 = vector.shape_cast %19 : vector<128xf32> to vector<1x128xf32>
    %21 = tpu.iota {dimensions = array<i32: 1>} : vector<1x128xi32>
    %c8_i32 = arith.constant 8 : i32
    %22 = vector.broadcast %c8_i32 : i32 to vector<1x128xi32>
    %23 = arith.cmpi slt, %21, %22 : vector<1x128xi32>
    %cst_12 = arith.constant -1.000000e+30 : f32
    %24 = vector.broadcast %cst_12 : f32 to vector<1x128xf32>
    %25 = arith.select %23, %20, %24 : vector<1x128xi1>, vector<1x128xf32>
    %cst_13 = arith.constant dense<0xFF800000> : vector<1xf32>
    %26 = vector.multi_reduction <maximumf>, %25, %cst_13 [1] : vector<1x128xf32> to vector<1xf32>
    %27 = vector.shape_cast %26 : vector<1xf32> to vector<1x1xf32>
    %28 = vector.broadcast %27 : vector<1x1xf32> to vector<1x128xf32>
    %29 = arith.subf %25, %28 : vector<1x128xf32>
    %30 = math.exp %29 : vector<1x128xf32>
    %cst_14 = arith.constant dense<0.000000e+00> : vector<1xf32>
    %31 = vector.multi_reduction <add>, %30, %cst_14 [1] : vector<1x128xf32> to vector<1xf32>
    %32 = vector.shape_cast %31 : vector<1xf32> to vector<1x1xf32>
    %33 = tpu.reciprocal %32 : vector<1x1xf32> -> vector<1x1xf32>
    %34 = vector.broadcast %33 : vector<1x1xf32> to vector<1x128xf32>
    %35 = arith.mulf %30, %34 : vector<1x128xf32>
    %c0_15 = arith.constant 0 : index
    %c0_16 = arith.constant 0 : index
    %c0_17 = arith.constant 0 : index
    %36 = vector.load %arg7[%c0_15, %c0_16, %c0_17] : memref<1x1x128xf32, #tpu.memory_space<vmem>>, vector<1x1x128xf32>
    %37 = vector.shape_cast %36 : vector<1x1x128xf32> to vector<1x128xf32>
    %38 = vector.shape_cast %35 : vector<1x128xf32> to vector<1x1x128xf32>
    tpu.vector_store %arg7[%c0_15, %c0_16, %c0_17], %38 {strides = array<i32>} : memref<1x1x128xf32, #tpu.memory_space<vmem>>, vector<1x1x128xf32>,
    return
  }
  func.func @transform_0(%arg0: i32) -> (i32, i32, i32) {
    %c0_i32 = arith.constant 0 : i32
    %c0_i32_0 = arith.constant 0 : i32
    %c0_i32_1 = arith.constant 0 : i32
    return %arg0, %c0_i32, %c0_i32_0 : i32, i32, i32
  }
  func.func @transform_1(%arg0: i32) -> (i32, i32) {
    %c0_i32 = arith.constant 0 : i32
    %c0_i32_0 = arith.constant 0 : i32
    %c0_i32_1 = arith.constant 0 : i32
    return %c0_i32, %c0_i32_0 : i32, i32
  }
  func.func @transform_2(%arg0: i32) -> (i32, i32) {
    %c0_i32 = arith.constant 0 : i32
    %c0_i32_0 = arith.constant 0 : i32
    %c0_i32_1 = arith.constant 0 : i32
    return %c0_i32, %c0_i32_0 : i32, i32
  }
  func.func @transform_3(%arg0: i32) -> (i32, i32) {
    %c0_i32 = arith.constant 0 : i32
    %c0_i32_0 = arith.constant 0 : i32
    %c0_i32_1 = arith.constant 0 : i32
    return %c0_i32, %c0_i32_0 : i32, i32
  }
  func.func @transform_4(%arg0: i32) -> (i32, i32) {
    %c0_i32 = arith.constant 0 : i32
    %c0_i32_0 = arith.constant 0 : i32
    %c0_i32_1 = arith.constant 0 : i32
    return %c0_i32, %c0_i32_0 : i32, i32
  }
  func.func @transform_5(%arg0: i32) -> (i32, i32) {
    %c0_i32 = arith.constant 0 : i32
    %c0_i32_0 = arith.constant 0 : i32
    %c0_i32_1 = arith.constant 0 : i32
    return %c0_i32, %c0_i32_0 : i32, i32
  }
  func.func @transform_6(%arg0: i32) -> (i32, i32, i32) {
    %c0_i32 = arith.constant 0 : i32
    %c0_i32_0 = arith.constant 0 : i32
    %c0_i32_1 = arith.constant 0 : i32
    return %arg0, %c0_i32, %c0_i32_0 : i32, i32, i32
  }
}

</mosaic_0001>

<llo_original>
// kernel: tpu_custom_call.1
$region0: #{tpu_custom_call.1}
  #allocation0 [shape = 'u32[]', space=smem, size = 0x4, offset = 0x4, fixed_abs, tag = 'smem constant byte address 0x4 - core index']
  #allocation1 [shape = 'u32[144,128]{1,0:T(1,128)}', space=vmem, size = 0x12000, scoped, tag = 'internal scratch']
  #allocation2 [shape = 'f32[32,128]{1,0:T(8,128)}', space=vmem, size = 0x4000, scoped, tag = 'scratch operand']
  %s0 = inlined_call_operand.vmem [shape: f32[1,1,32], index: 0, kind: input, shape index: {}]
  %s1 = inlined_call_operand.vmem [shape: f32[32,128], index: 1, kind: input, shape index: {}]
  %s2 = inlined_call_operand.vmem [shape: f32[32,32], index: 2, kind: input, shape index: {}]
  %s3 = inlined_call_operand.hbm [shape: f32[32,32], index: 3, kind: input, shape index: {}]
  %s4 = inlined_call_operand.vmem [shape: f32[32,1], index: 4, kind: input, shape index: {}]
  %s5 = inlined_call_operand.vmem [shape: f32[32,1], index: 5, kind: input, shape index: {}]
  %s6 = inlined_call_operand.hbm [shape: f32[1,1,128], index: 6, kind: output, shape index: {}]
  %s7 = sld [smem:[#allocation0]]
  $region42: #{tpu_custom_call.1} parent=0
    _
  %s9 = ssub.s32 1, %s7
  %s10 = scalar_select 0, %s9, %s7
  $region1: #{tpu_custom_call.1} parent=0
    #allocation3 [shape = 'u8[16384]{0}', space=vmem, size = 0x4000, scoped, tag = 'input window, operand 3, single buffered']
    #allocation4 [shape = 's32[1]{0}', space=sflag, size = 0x4, scoped, tag = 'scoped memory for tpu_custom_call.1']
    #allocation5 [shape = 's32[1]{0}', space=sflag, size = 0x4, scoped, tag = 'scoped memory for tpu_custom_call.1']
    #allocation6 [shape = 'u8[512]{0}', space=vmem, size = 0x400, scoped, tag = 'output window, operand 0, single buffered']
    %11 = vsyncpa [#allocation4], 0
    %12 = vsyncpa [#allocation5], 0
    // Predicated region
    $region2: #{tpu_custom_call.1} parent=1 // pred_check
      _
    $region3: #{tpu_custom_call.1} parent=1 // pred_check_branch
      %14 = sbr.rel (0) target = $region5
    $region4: #{tpu_custom_call.1} parent=1 // pred_region
      _
    $region5: #{tpu_custom_call.1} parent=1 // pred_fallthru
      _
    // Predicated region
    $region6: #{tpu_custom_call.1} parent=1 // pred_check
      _
    $region7: #{tpu_custom_call.1} parent=1 // pred_check_branch
      %16 = sbr.rel (0) target = $region9
    $region8: #{tpu_custom_call.1} parent=1 // pred_region
      _
    $region9: #{tpu_custom_call.1} parent=1 // pred_fallthru
      _
    // Predicated region
    $region10: #{tpu_custom_call.1} parent=1 // pred_check
      _
    $region11: #{tpu_custom_call.1} parent=1 // pred_check_branch
      %18 = sbr.rel (0) target = $region13
    $region12: #{tpu_custom_call.1} parent=1 // pred_region
      _
    $region13: #{tpu_custom_call.1} parent=1 // pred_fallthru
      _
    // Predicated region
    $region14: #{tpu_custom_call.1} parent=1 // pred_check
      _
    $region15: #{tpu_custom_call.1} parent=1 // pred_check_branch
      %20 = sbr.rel (0) target = $region17
    $region16: #{tpu_custom_call.1} parent=1 // pred_region
      %s22 = ssub.s32 512, 512
      %23 = vsyncadd [#allocation4], %s22
      %s24 = sshll.u32 [#allocation3], 4
      %s25 = int_to_ptr.vmem [resolvable:$true] %s24
      %30 = dma.hbm_to_vmem [thread:$0]  %s3, 512, %s25, [#allocation4], 128, 128, 8
    $region17: #{tpu_custom_call.1} parent=1 // pred_fallthru
      _
    // Predicated region
    $region18: #{tpu_custom_call.1} parent=1 // pred_check
      _
    $region19: #{tpu_custom_call.1} parent=1 // pred_check_branch
      %32 = sbr.rel (0) target = $region21
    $region20: #{tpu_custom_call.1} parent=1 // pred_region
      _
    $region21: #{tpu_custom_call.1} parent=1 // pred_fallthru
      _
    // Predicated region
    $region22: #{tpu_custom_call.1} parent=1 // pred_check
      _
    $region23: #{tpu_custom_call.1} parent=1 // pred_check_branch
      %34 = sbr.rel (0) target = $region25
    $region24: #{tpu_custom_call.1} parent=1 // pred_region
      _
    $region25: #{tpu_custom_call.1} parent=1 // pred_fallthru
      _
    // Predicated region
    $region26: #{tpu_custom_call.1} parent=1 // pred_check
      _
    $region27: #{tpu_custom_call.1} parent=1 // pred_check_branch
      %36 = sbr.rel (0) target = $region29
    $region28: #{tpu_custom_call.1} parent=1 // pred_region
      %37 = dma.done [#allocation4], 512
    $region29: #{tpu_custom_call.1} parent=1 // pred_fallthru
      _
    %p38 = scmp.eq.s32.totalorder 0, 0
    // Predicated region
    $region30: #{tpu_custom_call.1} parent=1 // pred_check
      %p39 = pneg %p38
    $region31: #{tpu_custom_call.1} parent=1 // pred_check_branch
      %41 = sbr.rel (%p39) target = $region33
    $region32: #{tpu_custom_call.1} parent=1 // pred_region
      %v42 = vld [vmem:[%s2] sm:$0xff]
      %v43 = vld [vmem:[%s2 + $0x8] sm:$0xff]
      %v44 = vld [vmem:[%s2 + $0x10] sm:$0xff]
      %v45 = vld [vmem:[%s2 + $0x18] sm:$0xff]
      %v46 = vld [vmem:[%s1] sm:$0xff]
      %v47 = vld [vmem:[%s1 + $0x8] sm:$0xff]
      %v48 = vld [vmem:[%s1 + $0x10] sm:$0xff]
      %v49 = vld [vmem:[%s1 + $0x18] sm:$0xff]
      %vm50 = vcmask 261120
      %v52 = vsel %vm50, %v42, 0
      %v55 = vsel %vm50, %v43, 0
      %v58 = vsel %vm50, %v44, 0
      %v61 = vsel %vm50, %v45, 0
      %63 = vmatprep.subr.mxu0 0.0
      %64 = vmatpush1.msra.mxu0 %v46
      %65 = vmatprep.subr.mxu0 0.0
      %66 = vmatpush1.msra.mxu0 %v47
      %67 = vmatprep.subr.mxu0 0.0
      %68 = vmatpush1.msra.mxu0 %v48
      %69 = vmatprep.subr.mxu0 0.0
      %70 = vmatpush1.msra.mxu0 %v49
      %71 = vmatprep.subr.mxu0 0.0
      %72 = vmatpush1.msra.mxu0 0.0
      %73 = vmatprep.subr.mxu0 0.0
      %74 = vmatpush1.msra.mxu0 0.0
      %75 = vmatprep.subr.mxu0 0.0
      %76 = vmatpush1.msra.mxu0 0.0
      %77 = vmatprep.subr.mxu0 0.0
      %78 = vmatpush1.msra.mxu0 0.0
      %79 = vmatprep.subr.mxu0 0.0
      %80 = vmatpush1.msra.mxu0 0.0
      %81 = vmatprep.subr.mxu0 0.0
      %82 = vmatpush1.msra.mxu0 0.0
      %83 = vmatprep.subr.mxu0 0.0
      %84 = vmatpush1.msra.mxu0 0.0
      %85 = vmatprep.subr.mxu0 0.0
      %86 = vmatpush1.msra.mxu0 0.0
      %87 = vmatprep.subr.mxu0 0.0
      %88 = vmatpush1.msra.mxu0 0.0
      %89 = vmatprep.subr.mxu0 0.0
      %90 = vmatpush1.msra.mxu0 0.0
      %91 = vmatprep.subr.mxu0 0.0
      %92 = vmatpush1.msra.mxu0 0.0
      %93 = vmatprep.subr.mxu0 0.0
      %94 = vmatpush1.msra.mxu0 0.0
      %95 = vmatprep.subr.mxu0 0.0
      %96 = vmatpush1.msra.mxu0 0.0
      %97 = vmatprep.subr.mxu0 0.0
      %98 = vmatpush1.msra.mxu0 0.0
      %99 = vmatprep.subr.mxu0 0.0
      %100 = vmatpush1.msra.mxu0 0.0
      %101 = vmatprep.subr.mxu0 0.0
      %102 = vmatpush1.msra.mxu0 0.0
      %103 = vmatprep.subr.mxu0 0.0
      %104 = vmatpush1.msra.mxu0 0.0
      %105 = vmatprep.subr.mxu0 0.0
      %106 = vmatpush1.msra.mxu0 0.0
      %107 = vmatprep.subr.mxu0 0.0
      %108 = vmatpush1.msra.mxu0 0.0
      %109 = vmatprep.subr.mxu0 0.0
      %110 = vmatpush1.msra.mxu0 0.0
      %111 = vmatprep.subr.mxu0 0.0
      %112 = vmatpush1.msra.mxu0 0.0
      %113 = vmatprep.subr.mxu0 0.0
      %114 = vmatpush1.msra.mxu0 0.0
      %115 = vmatprep.subr.mxu0 0.0
      %116 = vmatpush1.msra.mxu0 0.0
      %117 = vmatprep.subr.mxu0 0.0
      %118 = vmatpush1.msra.mxu0 0.0
      %119 = vmatprep.subr.mxu0 0.0
      %120 = vmatpush1.msra.mxu0 0.0
      %121 = vmatprep.subr.mxu0 0.0
      %122 = vmatpush1.msra.mxu0 0.0
      %123 = vmatprep.subr.mxu0 0.0
      %124 = vmatpush1.msra.mxu0 0.0
      %125 = vmatprep.subr.mxu0 0.0
      %126 = vmatpush1.msra.mxu0 0.0
      %127 = vmatprep.mubr.f32.mxu0 0.0
      %128 = vmatmul.mubr.f32.gmra.mrb[0].mxu0 %v52
      %v129 = vpop.f32.mrb[0].mxu0
      %v130 = vadd.f32 0.0, %v129
      %v131 = vpop.f32.mrb[0].mxu0
      %132 = vmatprep.mubr.f32.mxu0 0.0
      %133 = vmatmul.mubr.f32.gmra.mrb[0].mxu0 %v55
      %v134 = vpop.f32.mrb[0].mxu0
      %v135 = vadd.f32 0.0, %v134
      %v136 = vpop.f32.mrb[0].mxu0
      %137 = vmatprep.mubr.f32.mxu0 0.0
      %138 = vmatmul.mubr.f32.gmra.mrb[0].mxu0 %v58
      %v139 = vpop.f32.mrb[0].mxu0
      %v140 = vadd.f32 0.0, %v139
      %v141 = vpop.f32.mrb[0].mxu0
      %142 = vmatprep.mubr.f32.mxu0 0.0
      %143 = vmatmul.mubr.f32.gmra.mrb[0].mxu0 %v61
      %v144 = vpop.f32.mrb[0].mxu0
      %v145 = vadd.f32 0.0, %v144
      %v146 = vpop.f32.mrb[0].mxu0
      %147 = vdwg.mxu0
      %148 = vst [vmem:[#allocation2] sm:$0xff] %v130
      %149 = vst [vmem:[#allocation2 + $0x8] sm:$0xff] %v135
      %150 = vst [vmem:[#allocation2 + $0x10] sm:$0xff] %v140
      %151 = vst [vmem:[#allocation2 + $0x18] sm:$0xff] %v145
    $region33: #{tpu_custom_call.1} parent=1 // pred_fallthru
      _
    %v152 = vld [vmem:[%s0] sm:$0x1]
    %v153 = vld [vmem:[#allocation3] sm:$0xff]
    %v154 = vld [vmem:[#allocation3 + $0x8] sm:$0xff]
    %v155 = vld [vmem:[#allocation3 + $0x10] sm:$0xff]
    %v156 = vld [vmem:[#allocation3 + $0x18] sm:$0xff]
    %v158 = vlaneseq
    %v159 = vshrl.u32 %v158, 7
    %v160 = vsub.s32 0, %v159
    %v161 = vrot.slane %v152, %v160
    %v163 = vmul.f32 %v153, %v161
    %v164 = vmul.f32 %v154, %v161
    %v165 = vmul.f32 %v155, %v161
    %v166 = vmul.f32 %v156, %v161
    %vm167 = vcmask 261120
    %v168 = vsel %vm167, %v163, 0.0
    %169 = vadd.xlane.f32.xlu0 %v168
    %v170 = vpop.xlane.xlu0 %169
    %v171 = vsel %vm167, %v164, 0.0
    %172 = vadd.xlane.f32.xlu0 %v171
    %v173 = vpop.xlane.xlu0 %172
    %v174 = vsel %vm167, %v165, 0.0
    %175 = vadd.xlane.f32.xlu0 %v174
    %v176 = vpop.xlane.xlu0 %175
    %v177 = vsel %vm167, %v166, 0.0
    %178 = vadd.xlane.f32.xlu0 %v177
    %v179 = vpop.xlane.xlu0 %178
    %v180 = vld [vmem:[%s4] sm:$0xff]
    %v181 = vld [vmem:[%s4 + $0x8] sm:$0xff]
    %v182 = vld [vmem:[%s4 + $0x10] sm:$0xff]
    %v183 = vld [vmem:[%s4 + $0x18] sm:$0xff]
    %v184 = vadd.f32 %v170, %v180
    %v185 = vadd.f32 %v173, %v181
    %v186 = vadd.f32 %v176, %v182
    %v187 = vadd.f32 %v179, %v183
    %v188 = vld [vmem:[#allocation2] sm:$0xff]
    %v189 = vld [vmem:[#allocation2 + $0x8] sm:$0xff]
    %v190 = vld [vmem:[#allocation2 + $0x10] sm:$0xff]
    %v191 = vld [vmem:[#allocation2 + $0x18] sm:$0xff]
    %193 = vset.pattern.permute.xlu0 0
    %194 = vperm.xlu0 %193, %v184
    %v195 = vpop.permute.xlu0 %194
    %198 = vset.pattern.permute.xlu0 0
    %199 = vperm.xlu0 %198, %v185
    %v200 = vpop.permute.xlu0 %199
    %203 = vset.pattern.permute.xlu0 0
    %204 = vperm.xlu0 %203, %v186
    %v205 = vpop.permute.xlu0 %204
    %208 = vset.pattern.permute.xlu0 0
    %209 = vperm.xlu0 %208, %v187
    %v210 = vpop.permute.xlu0 %209
    %v212 = vadd.f32 %v188, %v195
    %v213 = vadd.f32 %v189, %v200
    %v214 = vadd.f32 %v190, %v205
    %v215 = vadd.f32 %v191, %v210
    %v216 = vtanh.pop %v212
    %v217 = vtanh.pop %v213
    %v218 = vtanh.pop %v214
    %v219 = vtanh.pop %v215
    %v220 = vld [vmem:[%s5] sm:$0xff]
    %v221 = vld [vmem:[%s5 + $0x8] sm:$0xff]
    %v222 = vld [vmem:[%s5 + $0x10] sm:$0xff]
    %v223 = vld [vmem:[%s5 + $0x18] sm:$0xff]
    %225 = vset.pattern.permute.xlu0 0
    %226 = vperm.xlu0 %225, %v220
    %v227 = vpop.permute.xlu0 %226
    %230 = vset.pattern.permute.xlu0 0
    %231 = vperm.xlu0 %230, %v221
    %v232 = vpop.permute.xlu0 %231
    %235 = vset.pattern.permute.xlu0 0
    %236 = vperm.xlu0 %235, %v222
    %v237 = vpop.permute.xlu0 %236
    %240 = vset.pattern.permute.xlu0 0
    %241 = vperm.xlu0 %240, %v223
    %v242 = vpop.permute.xlu0 %241
    %v244 = vmul.f32 %v227, %v216
    %v245 = vmul.f32 %v232, %v217
    %v246 = vmul.f32 %v237, %v218
    %v247 = vmul.f32 %v242, %v219
    %v248 = vadd.f32 %v244, %v245
    %v249 = vadd.f32 %v248, %v246
    %v250 = vadd.f32 %v249, %v247
    %v251 = vrot.slane %v250, 4
    %v252 = vadd.f32 %v250, %v251
    %v253 = vrot.slane %v252, 2
    %v254 = vadd.f32 %v252, %v253
    %v255 = vrot.slane %v254, 1
    %v256 = vadd.f32 %v254, %v255
    %v257 = vlaneseq
    %v258 = vand.u32 %v257, 127
    %vm259 = vcmp.lt.s32.totalorder %v258, 8
    %v260 = vsel %vm259, %v256, -1e+30
    %261 = vmax.xlane.f32.xlu0 %v260
    %v262 = vpop.xlane.xlu0 %261
    %v263 = vsub.f32 %v260, %v262
    %v264 = vmul.f32 %v263, 1.442695
    %v265 = vpow.pop %v264
    %266 = vadd.xlane.f32.xlu0 %v265
    %v267 = vpop.xlane.xlu0 %266
    %v268 = vrcp.pop %v267
    %v269 = vmul.f32 %v265, %v268
    %270 = vst [vmem:[#allocation6] sm:$0x1] %v269
    // Predicated region
    $region34: #{tpu_custom_call.1} parent=1 // pred_check
      _
    $region35: #{tpu_custom_call.1} parent=1 // pred_check_branch
      %272 = sbr.rel (0) target = $region37
    $region36: #{tpu_custom_call.1} parent=1 // pred_region
      %s274 = ssub.s32 16, 16
      %275 = vsyncadd [#allocation5], %s274
      %s277 = sshll.u32 [#allocation6], 4
      %s278 = int_to_ptr.vmem [resolvable:$true] %s277
      %280 = dma.vmem_to_hbm [thread:$0]  %s278, 16, %s6, [#allocation5]
    $region37: #{tpu_custom_call.1} parent=1 // pred_fallthru
      _
    // Predicated region
    $region38: #{tpu_custom_call.1} parent=1 // pred_check
      _
    $region39: #{tpu_custom_call.1} parent=1 // pred_check_branch
      %282 = sbr.rel (0) target = $region41
    $region40: #{tpu_custom_call.1} parent=1 // pred_region
      %283 = dma.done [#allocation5], 16
    $region41: #{tpu_custom_call.1} parent=1 // pred_fallthru
      _
    %284 = vsyncpa [#allocation4], 1
    %285 = vsyncpa [#allocation5], 1

</llo_original>
